<compile_context>
chip_gen: v5e
topology: v5e:2x2
jax: 0.10.0
libtpu: 0.0.40
codegen_flags: <defaults>
</compile_context>

<pallas_src>
import functools

import jax
import jax.numpy as jnp
from jax import lax
from jax.experimental import pallas as pl
from jax.experimental.pallas import tpu as pltpu


def _round_up(n: int, m: int) -> int:
    return (n + m - 1) // m * m


def _sigmoid(h):
    # Single-transcendental sigmoid: one EUP tanh; the mul/add ride the VALU.
    return 0.5 * jnp.tanh(0.5 * h) + 0.5


def _autoencoder_kernel(x_ref, w_ref, b_ref, o_ref, *, n_chunks):
    w = w_ref[...]                      # [UP, UP] bf16, PyTorch [out, in] layout
    b = b_ref[...]                      # [1,  UP] f32
    dn = (((1,), (1,)), ((), ()))       # contract x's last dim with W's in-dim

    rows = x_ref.shape[0] // n_chunks
    # Static unroll over independent sub-chunks: lets the LLO scheduler overlap
    # one chunk's sigmoid (EUP/VALU) with the next chunk's matmuls (MXU).
    for c in range(n_chunks):
        sl = pl.ds(c * rows, rows)
        x = x_ref[sl, :].astype(jnp.bfloat16)

        # First pass through the shared linear layer + sigmoid (f32 epilogue).
        h1 = lax.dot_general(x, w, dn, preferred_element_type=jnp.float32) + b
        s1 = _sigmoid(h1)

        # Second pass through the SAME layer + sigmoid.
        h2 = lax.dot_general(s1.astype(jnp.bfloat16), w, dn,
                             preferred_element_type=jnp.float32) + b
        o_ref[sl, :] = _sigmoid(h2).astype(o_ref.dtype)


def prepare_params(weight, bias):
    """Pad + bf16-cast the Linear parameters once (hoisted out of the per-call
    path; weights are reused across forward calls)."""
    U = weight.shape[0]
    UP = _round_up(U, 128)                      # lane-dense feature dim
    if UP == U:
        wp = weight.astype(jnp.bfloat16)
        bp = bias.astype(jnp.float32).reshape(1, U)
    else:
        wp = jnp.zeros((UP, UP), jnp.bfloat16).at[:U, :U].set(
            weight.astype(jnp.bfloat16))
        bp = jnp.zeros((1, UP), jnp.float32).at[0, :U].set(
            bias.astype(jnp.float32))
    return wp, bp


def autoencoder_forward(x, w_prepared, b_prepared, *, block_batch=512):
    """x: [B, units]; w_prepared/b_prepared from prepare_params().
    Returns [B, units] in x.dtype."""
    B, U = x.shape
    UP = w_prepared.shape[0]

    # Batch tile: guarantee >= 2 grid steps when possible so the "parallel"
    # axis actually shards over both TensorCores on v7x.
    if B <= 8:
        tb = _round_up(max(B, 1), 8)
    else:
        tb = min(block_batch, _round_up(pl.cdiv(B, 2), 8))
    Bp = _round_up(B, tb)

    # Only materialize a padded bf16 copy of x when padding is truly required;
    # otherwise pass x through untouched (cast to bf16 inside the kernel).
    if UP != U or Bp != B:
        xk = jnp.zeros((Bp, UP), jnp.bfloat16).at[:B, :U].set(
            x.astype(jnp.bfloat16))
    else:
        xk = x

    # Sub-chunk the batch tile only when the matmuls dominate (MXU-bound UP).
    n_chunks = 2 if (UP >= 256 and tb >= 64 and tb % 16 == 0) else 1

    out_dtype = jnp.bfloat16   # values already carry bf16-operand precision

    # VMEM footprint: single-buffered weight + bias, double-buffered x / out.
    footprint = (UP * UP * 2 + UP * 4
                 + 2 * tb * UP * jnp.dtype(xk.dtype).itemsize
                 + 2 * tb * UP * jnp.dtype(out_dtype).itemsize)
    try:
        cap = int(pltpu.get_tpu_info().vmem_capacity_bytes)
    except Exception:
        cap = 64 * 1024 * 1024                  # conservative (v7x per-TC)
    vmem_limit = max(16 * 1024 * 1024,
                     min(cap - 8 * 1024 * 1024,
                         int(1.5 * footprint) + 2 * 1024 * 1024))

    out = pl.pallas_call(
        functools.partial(_autoencoder_kernel, n_chunks=n_chunks),
        out_shape=jax.ShapeDtypeStruct((Bp, UP), out_dtype),
        grid_spec=pltpu.PrefetchScalarGridSpec(
            num_scalar_prefetch=0,
            grid=(Bp // tb,),
            in_specs=[
                pl.BlockSpec((tb, UP), lambda i: (i, 0)),      # x: batch-tiled
                pl.BlockSpec((UP, UP), lambda i: (0, 0),
                             pipeline_mode=pl.Buffered(1)),    # W: resident, 1-buf
                pl.BlockSpec((1, UP), lambda i: (0, 0),
                             pipeline_mode=pl.Buffered(1)),    # b: resident, 1-buf
            ],
            out_specs=pl.BlockSpec((tb, UP), lambda i: (i, 0)),
        ),
        compiler_params=pltpu.CompilerParams(
            dimension_semantics=("parallel",),                 # shard batch on v7x
            vmem_limit_bytes=vmem_limit,
        ),
    )(xk, w_prepared, b_prepared)

    # TODO(synk): once UP^2*2B exceeds ~1/4 of the chip's VMEM (UP >~ 2800 on
    # v7x, >~ 5600 on v5e/v6e), drop this fused resident-weight kernel in favor
    # of two chained tiled-matmul pallas_calls with (M, N, K) grids.
    return out[:B, :U].astype(x.dtype)


def reference_forward(x, weight, bias):
    s1 = jax.nn.sigmoid(x @ weight.T + bias)
    s2 = jax.nn.sigmoid(s1 @ weight.T + bias)
    return s2


if __name__ == "__main__":
    units = 32
    batch = 512   # two 256-row tiles -> exercises batch tiling / resident weight

    key = jax.random.PRNGKey(0)
    kx, kw, kb = jax.random.split(key, 3)

    # Deterministic "Linear(units, units)" parameters (PyTorch layout:
    # weight [out, in], bias [out]); uniform(-1/sqrt(units), 1/sqrt(units)).
    bound = 1.0 / (units ** 0.5)
    weight = jax.random.uniform(kw, (units, units), jnp.float32, -bound, bound)
    bias = jax.random.uniform(kb, (units,), jnp.float32, -bound, bound)
    x = jax.random.normal(kx, (batch, units), jnp.float32)

    wp, bp = prepare_params(weight, bias)      # hoisted, done once per weight set
    out = jax.block_until_ready(autoencoder_forward(x, wp, bp))

    ref = reference_forward(x, weight, bias)
    assert out.shape == (batch, units)
    assert out.dtype == x.dtype
    # bf16 matmul operands + bf16 output storage -> bf16-level tolerance
    # (kernel is intentionally bf16-precision).
    assert jnp.allclose(out, ref, atol=2e-2, rtol=2e-2), "mismatch vs reference"

    print("KERNEL_OK")
</pallas_src>

<mosaic_0001>
module attributes {stable_mosaic.version = 11 : i64} {
  func.func @_autoencoder_kernel(%arg0: i32, %arg1: memref<256x128xbf16, #tpu.memory_space<vmem>>, %arg2: memref<128x128xbf16, #tpu.memory_space<vmem>>, %arg3: memref<1x128xf32, #tpu.memory_space<vmem>>, %arg4: memref<256x128xbf16, #tpu.memory_space<vmem>>) attributes {dimension_semantics = [#tpu.dimension_semantics<parallel>], iteration_bounds = array<i64: 2>, scalar_prefetch = 0 : i64, scratch_operands = 0 : i64, tpu.core_type = #tpu.core_type<tc>, window_params = [{transform_indices = @transform_0, window_bounds = array<i64: 256, 128>}, {pipeline_mode = #tpu.pipeline_mode<synchronous>, transform_indices = @transform_1, window_bounds = array<i64: 128, 128>}, {pipeline_mode = #tpu.pipeline_mode<synchronous>, transform_indices = @transform_2, window_bounds = array<i64: 1, 128>}, {transform_indices = @transform_3, window_bounds = array<i64: 256, 128>}]} {
    %c0 = arith.constant 0 : index
    %c0_0 = arith.constant 0 : index
    %0 = vector.load %arg2[%c0, %c0_0] : memref<128x128xbf16, #tpu.memory_space<vmem>>, vector<128x128xbf16>
    %c0_1 = arith.constant 0 : index
    %c0_2 = arith.constant 0 : index
    %1 = vector.load %arg3[%c0_1, %c0_2] : memref<1x128xf32, #tpu.memory_space<vmem>>, vector<1x128xf32>
    %c0_3 = arith.constant 0 : index
    %c0_4 = arith.constant 0 : index
    %2 = vector.load %arg1[%c0_3, %c0_4] : memref<256x128xbf16, #tpu.memory_space<vmem>>, vector<256x128xbf16>
    %cst = arith.constant dense<0.000000e+00> : vector<256x128xf32>
    %3 = tpu.matmul %2, %0, %cst {dimension_numbers = #tpu.dot_dimension_numbers<[1], [1], [0], [0], [0, 0, 1, 0], [], []>} : vector<256x128xbf16>, vector<128x128xbf16>, vector<256x128xf32> -> vector<256x128xf32>
    %4 = vector.broadcast %1 : vector<1x128xf32> to vector<256x128xf32>
    %5 = arith.addf %3, %4 : vector<256x128xf32>
    %cst_5 = arith.constant 5.000000e-01 : f32
    %6 = vector.broadcast %cst_5 : f32 to vector<256x128xf32>
    %7 = arith.mulf %6, %5 : vector<256x128xf32>
    %8 = math.tanh %7 : vector<256x128xf32>
    %cst_6 = arith.constant 5.000000e-01 : f32
    %9 = vector.broadcast %cst_6 : f32 to vector<256x128xf32>
    %10 = arith.mulf %9, %8 : vector<256x128xf32>
    %cst_7 = arith.constant 5.000000e-01 : f32
    %11 = vector.broadcast %cst_7 : f32 to vector<256x128xf32>
    %12 = arith.addf %10, %11 : vector<256x128xf32>
    %13 = arith.truncf %12 : vector<256x128xf32> to vector<256x128xbf16>
    %cst_8 = arith.constant dense<0.000000e+00> : vector<256x128xf32>
    %14 = tpu.matmul %13, %0, %cst_8 {dimension_numbers = #tpu.dot_dimension_numbers<[1], [1], [0], [0], [0, 0, 1, 0], [], []>} : vector<256x128xbf16>, vector<128x128xbf16>, vector<256x128xf32> -> vector<256x128xf32>
    %15 = vector.broadcast %1 : vector<1x128xf32> to vector<256x128xf32>
    %16 = arith.addf %14, %15 : vector<256x128xf32>
    %cst_9 = arith.constant 5.000000e-01 : f32
    %17 = vector.broadcast %cst_9 : f32 to vector<256x128xf32>
    %18 = arith.mulf %17, %16 : vector<256x128xf32>
    %19 = math.tanh %18 : vector<256x128xf32>
    %cst_10 = arith.constant 5.000000e-01 : f32
    %20 = vector.broadcast %cst_10 : f32 to vector<256x128xf32>
    %21 = arith.mulf %20, %19 : vector<256x128xf32>
    %cst_11 = arith.constant 5.000000e-01 : f32
    %22 = vector.broadcast %cst_11 : f32 to vector<256x128xf32>
    %23 = arith.addf %21, %22 : vector<256x128xf32>
    %24 = arith.truncf %23 : vector<256x128xf32> to vector<256x128xbf16>
    %c0_12 = arith.constant 0 : index
    %c0_13 = arith.constant 0 : index
    %25 = vector.load %arg4[%c0_12, %c0_13] : memref<256x128xbf16, #tpu.memory_space<vmem>>, vector<256x128xbf16>
    tpu.vector_store %arg4[%c0_12, %c0_13], %24 {strides = array<i32>} : memref<256x128xbf16, #tpu.memory_space<vmem>>, vector<256x128xbf16>,
    return
  }
  func.func @transform_0(%arg0: i32) -> (i32, i32) {
    %c0_i32 = arith.constant 0 : i32
    %c0_i32_0 = arith.constant 0 : i32
    return %arg0, %c0_i32 : i32, i32
  }
  func.func @transform_1(%arg0: i32) -> (i32, i32) {
    %c0_i32 = arith.constant 0 : i32
    %c0_i32_0 = arith.constant 0 : i32
    %c0_i32_1 = arith.constant 0 : i32
    return %c0_i32, %c0_i32_0 : i32, i32
  }
  func.func @transform_2(%arg0: i32) -> (i32, i32) {
    %c0_i32 = arith.constant 0 : i32
    %c0_i32_0 = arith.constant 0 : i32
    %c0_i32_1 = arith.constant 0 : i32
    return %c0_i32, %c0_i32_0 : i32, i32
  }
  func.func @transform_3(%arg0: i32) -> (i32, i32) {
    %c0_i32 = arith.constant 0 : i32
    %c0_i32_0 = arith.constant 0 : i32
    return %arg0, %c0_i32 : i32, i32
  }
}

</mosaic_0001>

<llo_original>
// kernel: tpu_custom_call.1
$region0: #{tpu_custom_call.1}
  #allocation0 [shape = 'u32[]', space=smem, size = 0x4, offset = 0x4, fixed_abs, tag = 'smem constant byte address 0x4 - core index']
  #allocation1 [shape = 'u32[72,128]{1,0:T(1,128)}', space=vmem, size = 0x9000, scoped, tag = 'internal scratch']
  %s0 = inlined_call_operand.hbm [shape: bf16[512,128], index: 0, kind: input, shape index: {}]
  %s1 = inlined_call_operand.hbm [shape: bf16[128,128], index: 1, kind: input, shape index: {}]
  %s2 = inlined_call_operand.vmem [shape: f32[1,128], index: 2, kind: input, shape index: {}]
  %s3 = inlined_call_operand.hbm [shape: bf16[512,128], index: 3, kind: output, shape index: {}]
  %s4 = sld [smem:[#allocation0]]
  $region53: #{tpu_custom_call.1} parent=0
    _
  %s6 = ssub.s32 1, %s4
  %s7 = scalar_select 0, %s6, %s4
  $region1: #{tpu_custom_call.1} parent=0
    #allocation2 [shape = 'u8[131072]{0}', space=vmem, size = 0x20000, scoped, tag = 'input window, operand 0']
    #allocation3 [shape = 's32[2]{0}', space=sflag, size = 0x8, scoped, tag = 'scoped memory for tpu_custom_call.1']
    #allocation4 [shape = 's32[2]{0}', space=sflag, size = 0x8, scoped, tag = 'scoped memory for tpu_custom_call.1']
    #allocation5 [shape = 'u8[32768]{0}', space=vmem, size = 0x8000, scoped, tag = 'input window, operand 1, single buffered']
    #allocation6 [shape = 's32[1]{0}', space=sflag, size = 0x4, scoped, tag = 'scoped memory for tpu_custom_call.1']
    #allocation7 [shape = 'u8[131072]{0}', space=vmem, size = 0x20000, scoped, tag = 'output window, operand 0']
    %8 = vsyncpa [#allocation3], 0
    %s9 = scalar_lea.sflag [#allocation3], 1
    %10 = vsyncpa %s9, 0
    %11 = vsyncpa [#allocation6], 0
    %12 = vsyncpa [#allocation4], 0
    %s13 = scalar_lea.sflag [#allocation4], 1
    %14 = vsyncpa %s13, 0
    loop: start=0, step=1, limit=4
    $region2: #{tpu_custom_call.1} parent=1 // loop_pre_header
      _
    $region3: #{tpu_custom_call.1} parent=1 // loop_header
      %s16 = sphi 0, %s20
      %p17 = scmp.ge.s32.totalorder %s16, 4
      %s26 = sphi 0, %s28
      %s29 = sphi 0, %s26
      %s30 = sphi 0, %s29
      %s46 = sphi 0, %s30
      %s50 = sphi 0, %s50
      %s52 = sphi 0, %s50
      %s53 = sphi 0, %s52
      %s67 = sphi 0, %s53
      %s71 = sphi 0, %s71
      %s73 = sphi 0, %s71
      %s74 = sphi 0, %s73
      %s88 = sphi 0, %s74
      %s94 = sphi 0, %s96
      %s97 = sphi 0, %s94
      %s98 = sphi 0, %s97
      %s114 = sphi 0, %s98
    $region4: #{tpu_custom_call.1} parent=1 // loop_header_branch
      %19 = sbr.rel (%p17) target = $region8
    $region5: #{tpu_custom_call.1} parent=1 // loop_body
      %s21 = ssub.s32 %s16, 1
      %s22 = ssub.s32 %s16, 2
      %s23 = sadd.s32 %s16, 1
      %s24 = ssub.s32 %s16, %s23
      %p25 = scmp.eq.s32.totalorder %s24, 0
      %s27 = sadd.s32 %s26, 1
      %s28 = scalar_select %p25, %s26, %s27
      %p31 = pneg %p25
      %p32 = scmp.eq.s32.totalorder %s16, 1
      %p33 = por %p31, %p32
      %p34 = scmp.ne.s32.totalorder %s26, %s29
      %p35 = scmp.eq.s32.totalorder %s16, 0
      %p36 = por %p34, %p35
      %p37 = scmp.ne.s32.totalorder %s26, %s29
      %p38 = scmp.eq.s32.totalorder %s21, 1
      %p39 = por %p37, %p38
      %p40 = scmp.ne.s32.totalorder %s29, %s30
      %p41 = scmp.eq.s32.totalorder %s21, 0
      %p42 = por %p40, %p41
      %p43 = scmp.ne.s32.totalorder %s29, %s30
      %p44 = scmp.eq.s32.totalorder %s22, 1
      %p45 = por %p43, %p44
      %p47 = scmp.ne.s32.totalorder %s30, %s46
      %p48 = scmp.eq.s32.totalorder %s22, 0
      %p49 = por %p47, %p48
      %s51 = sadd.s32 %s50, 1
      %p54 = scmp.eq.s32.totalorder %s16, 1
      %p55 = scmp.ne.s32.totalorder %s50, %s52
      %p56 = scmp.eq.s32.totalorder %s16, 0
      %p57 = por %p55, %p56
      %p58 = scmp.ne.s32.totalorder %s50, %s52
      %p59 = scmp.eq.s32.totalorder %s21, 1
      %p60 = por %p58, %p59
      %p61 = scmp.ne.s32.totalorder %s52, %s53
      %p62 = scmp.eq.s32.totalorder %s21, 0
      %p63 = por %p61, %p62
      %p64 = scmp.ne.s32.totalorder %s52, %s53
      %p65 = scmp.eq.s32.totalorder %s22, 1
      %p66 = por %p64, %p65
      %p68 = scmp.ne.s32.totalorder %s53, %s67
      %p69 = scmp.eq.s32.totalorder %s22, 0
      %p70 = por %p68, %p69
      %s72 = sadd.s32 %s71, 1
      %p75 = scmp.eq.s32.totalorder %s16, 1
      %p76 = scmp.ne.s32.totalorder %s71, %s73
      %p77 = scmp.eq.s32.totalorder %s16, 0
      %p78 = por %p76, %p77
      %p79 = scmp.ne.s32.totalorder %s71, %s73
      %p80 = scmp.eq.s32.totalorder %s21, 1
      %p81 = por %p79, %p80
      %p82 = scmp.ne.s32.totalorder %s73, %s74
      %p83 = scmp.eq.s32.totalorder %s21, 0
      %p84 = por %p82, %p83
      %p85 = scmp.ne.s32.totalorder %s73, %s74
      %p86 = scmp.eq.s32.totalorder %s22, 1
      %p87 = por %p85, %p86
      %p89 = scmp.ne.s32.totalorder %s74, %s88
      %p90 = scmp.eq.s32.totalorder %s22, 0
      %p91 = por %p89, %p90
      %s92 = ssub.s32 %s16, %s23
      %p93 = scmp.eq.s32.totalorder %s92, 0
      %s95 = sadd.s32 %s94, 1
      %s96 = scalar_select %p93, %s94, %s95
      %p99 = pneg %p93
      %p100 = scmp.eq.s32.totalorder %s16, 1
      %p101 = por %p99, %p100
      %p102 = scmp.ne.s32.totalorder %s94, %s97
      %p103 = scmp.eq.s32.totalorder %s16, 0
      %p104 = por %p102, %p103
      %p105 = scmp.ne.s32.totalorder %s94, %s97
      %p106 = scmp.eq.s32.totalorder %s21, 1
      %p107 = por %p105, %p106
      %p108 = scmp.ne.s32.totalorder %s97, %s98
      %p109 = scmp.eq.s32.totalorder %s21, 0
      %p110 = por %p108, %p109
      %p111 = scmp.ne.s32.totalorder %s97, %s98
      %p112 = scmp.eq.s32.totalorder %s22, 1
      %p113 = por %p111, %p112
      %p115 = scmp.ne.s32.totalorder %s98, %s114
      %p116 = scmp.eq.s32.totalorder %s22, 0
      %p117 = por %p115, %p116
      %p118 = scmp.le.s32.totalorder 1, %s16
      %p119 = scmp.lt.s32.totalorder %s16, 3
      %p120 = pnand %p118, %p119
      %p121 = pneg %p120
      // Predicated region
      $region9: #{tpu_custom_call.1} parent=5 // pred_check
        _
      $region10: #{tpu_custom_call.1} parent=5 // pred_check_branch
        %123 = sbr.rel (%p120) target = $region12
      $region11: #{tpu_custom_call.1} parent=5 // pred_region
        %s124 = ssub.s32 %s16, 1
        // Predicated region
        $region13: #{tpu_custom_call.1} parent=11 // pred_check
          %p125 = pneg %p63
        $region14: #{tpu_custom_call.1} parent=11 // pred_check_branch
          %127 = sbr.rel (%p125) target = $region16
        $region15: #{tpu_custom_call.1} parent=11 // pred_region
          %129 = vsyncadd [#allocation6], 0
          %s130 = sshll.u32 %s1, 4
          %s131 = int_to_ptr.hbm [resolvable:$true] %s130
          %s132 = sshll.u32 [#allocation5], 4
          %s133 = int_to_ptr.vmem [resolvable:$true] %s132
          %138 = dma.hbm_to_vmem [thread:$0]  %s131, 1024, %s133, [#allocation6], 64, 64, 4
        $region16: #{tpu_custom_call.1} parent=11 // pred_fallthru
          _
        // Predicated region
        $region17: #{tpu_custom_call.1} parent=11 // pred_check
          %p139 = pneg %p84
        $region18: #{tpu_custom_call.1} parent=11 // pred_check_branch
          %141 = sbr.rel (%p139) target = $region20
        $region19: #{tpu_custom_call.1} parent=11 // pred_region
          _
        $region20: #{tpu_custom_call.1} parent=11 // pred_fallthru
          _
      $region12: #{tpu_custom_call.1} parent=5 // pred_fallthru
        _
      %p142 = scmp.lt.s32.totalorder %s16, 2
      // Predicated region
      $region21: #{tpu_custom_call.1} parent=5 // pred_check
        %p143 = pneg %p142
      $region22: #{tpu_custom_call.1} parent=5 // pred_check_branch
        %145 = sbr.rel (%p143) target = $region24
      $region23: #{tpu_custom_call.1} parent=5 // pred_region
        // Predicated region
        $region25: #{tpu_custom_call.1} parent=23 // pred_check
          %p146 = pneg %p36
        $region26: #{tpu_custom_call.1} parent=23 // pred_check_branch
          %148 = sbr.rel (%p146) target = $region28
        $region27: #{tpu_custom_call.1} parent=23 // pred_region
          %s149 = sand.u32 %s26, 1
          %s150 = scalar_lea.sflag [#allocation3], %s149
          %s151 = sand.u32 %s26, 1
          %s152 = smul.addr %s151, 128
          %s153 = scalar_lea.vmem [#allocation2], %s152
          %s154 = smul.u32 32, %s16
          %156 = vsyncadd %s150, 0
          %s157 = smul.addr %s154, 4
          %s158 = scalar_lea.hbm %s0, %s157
          %s159 = sshll.u32 %s158, 4
          %s160 = int_to_ptr.hbm [resolvable:$true] %s159
          %s161 = sshll.u32 %s153, 4
          %s162 = int_to_ptr.vmem [resolvable:$true] %s161
          %167 = dma.hbm_to_vmem [thread:$0]  %s160, 2048, %s162, %s150, 64, 64, 4
        $region28: #{tpu_custom_call.1} parent=23 // pred_fallthru
          _
      $region24: #{tpu_custom_call.1} parent=5 // pred_fallthru
        _
      %p168 = scmp.le.s32.totalorder 1, %s16
      %p169 = scmp.lt.s32.totalorder %s16, 3
      %p170 = pnand %p168, %p169
      %p171 = pneg %p170
      // Predicated region
      $region29: #{tpu_custom_call.1} parent=5 // pred_check
        _
      $region30: #{tpu_custom_call.1} parent=5 // pred_check_branch
        %173 = sbr.rel (%p170) target = $region32
      $region31: #{tpu_custom_call.1} parent=5 // pred_region
        %s174 = ssub.s32 %s16, 1
        %s175 = sand.u32 %s29, 1
        %s176 = scalar_lea.sflag [#allocation3], %s175
        %s177 = sand.u32 %s29, 1
        %s178 = smul.addr %s177, 128
        %s179 = scalar_lea.vmem [#allocation2], %s178
        // Predicated region
        $region33: #{tpu_custom_call.1} parent=31 // pred_check
          %p180 = pneg %p42
        $region34: #{tpu_custom_call.1} parent=31 // pred_check_branch
          %182 = sbr.rel (%p180) target = $region36
        $region35: #{tpu_custom_call.1} parent=31 // pred_region
          %184 = dma.done %s176, 2048
        $region36: #{tpu_custom_call.1} parent=31 // pred_fallthru
          _
        // Predicated region
        $region37: #{tpu_custom_call.1} parent=31 // pred_check
          %p185 = pneg %p63
        $region38: #{tpu_custom_call.1} parent=31 // pred_check_branch
          %187 = sbr.rel (%p185) target = $region40
        $region39: #{tpu_custom_call.1} parent=31 // pred_region
          %189 = dma.done [#allocation6], 1024
        $region40: #{tpu_custom_call.1} parent=31 // pred_fallthru
          _
        %s190 = sand.u32 %s29, 1
        %s191 = scalar_lea.sflag [#allocation3], %s190
        %s192 = sand.u32 %s29, 1
        %s193 = smul.addr %s192, 128
        %s194 = scalar_lea.vmem [#allocation2], %s193
        %p195 = pneg %p42
        %p196 = pneg %p39
        %p197 = pneg %p63
        %p198 = pneg %p60
        %p199 = pneg %p84
        %p200 = pneg %p81
        %p201 = pneg %p110
        %p202 = pneg %p107
        %s203 = sand.u32 %s97, 1
        %s204 = scalar_lea.sflag [#allocation4], %s203
        %s205 = sand.u32 %s97, 1
        %s206 = smul.addr %s205, 128
        %s207 = scalar_lea.vmem [#allocation7], %s206
        %s208 = smul.u32 32, %s21
        %s209 = smul.u32 32, %s21
        %v210 = vld [vmem:[#allocation5] sm:$0xf]
        %v211 = vld [vmem:[#allocation5 + $0x4] sm:$0xf]
        %v212 = vld [vmem:[#allocation5 + $0x8] sm:$0xf]
        %v213 = vld [vmem:[#allocation5 + $0xc] sm:$0xf]
        %v214 = vld [vmem:[#allocation5 + $0x10] sm:$0xf]
        %v215 = vld [vmem:[#allocation5 + $0x14] sm:$0xf]
        %v216 = vld [vmem:[#allocation5 + $0x18] sm:$0xf]
        %v217 = vld [vmem:[#allocation5 + $0x1c] sm:$0xf]
        %v218 = vld [vmem:[#allocation5 + $0x20] sm:$0xf]
        %v219 = vld [vmem:[#allocation5 + $0x24] sm:$0xf]
        %v220 = vld [vmem:[#allocation5 + $0x28] sm:$0xf]
        %v221 = vld [vmem:[#allocation5 + $0x2c] sm:$0xf]
        %v222 = vld [vmem:[#allocation5 + $0x30] sm:$0xf]
        %v223 = vld [vmem:[#allocation5 + $0x34] sm:$0xf]
        %v224 = vld [vmem:[#allocation5 + $0x38] sm:$0xf]
        %v225 = vld [vmem:[#allocation5 + $0x3c] sm:$0xf]
        %v226 = vld [vmem:[%s2] sm:$0x1]
        %v227 = vld [vmem:[%s179] sm:$0xf]
        %v228 = vld [vmem:[%s179 + $0x4] sm:$0xf]
        %v229 = vld [vmem:[%s179 + $0x8] sm:$0xf]
        %v230 = vld [vmem:[%s179 + $0xc] sm:$0xf]
        %v231 = vld [vmem:[%s179 + $0x10] sm:$0xf]
        %v232 = vld [vmem:[%s179 + $0x14] sm:$0xf]
        %v233 = vld [vmem:[%s179 + $0x18] sm:$0xf]
        %v234 = vld [vmem:[%s179 + $0x1c] sm:$0xf]
        %v235 = vld [vmem:[%s179 + $0x20] sm:$0xf]
        %v236 = vld [vmem:[%s179 + $0x24] sm:$0xf]
        %v237 = vld [vmem:[%s179 + $0x28] sm:$0xf]
        %v238 = vld [vmem:[%s179 + $0x2c] sm:$0xf]
        %v239 = vld [vmem:[%s179 + $0x30] sm:$0xf]
        %v240 = vld [vmem:[%s179 + $0x34] sm:$0xf]
        %v241 = vld [vmem:[%s179 + $0x38] sm:$0xf]
        %v242 = vld [vmem:[%s179 + $0x3c] sm:$0xf]
        %v243 = vld [vmem:[%s179 + $0x40] sm:$0xf]
        %v244 = vld [vmem:[%s179 + $0x44] sm:$0xf]
        %v245 = vld [vmem:[%s179 + $0x48] sm:$0xf]
        %v246 = vld [vmem:[%s179 + $0x4c] sm:$0xf]
        %v247 = vld [vmem:[%s179 + $0x50] sm:$0xf]
        %v248 = vld [vmem:[%s179 + $0x54] sm:$0xf]
        %v249 = vld [vmem:[%s179 + $0x58] sm:$0xf]
        %v250 = vld [vmem:[%s179 + $0x5c] sm:$0xf]
        %v251 = vld [vmem:[%s179 + $0x60] sm:$0xf]
        %v252 = vld [vmem:[%s179 + $0x64] sm:$0xf]
        %v253 = vld [vmem:[%s179 + $0x68] sm:$0xf]
        %v254 = vld [vmem:[%s179 + $0x6c] sm:$0xf]
        %v255 = vld [vmem:[%s179 + $0x70] sm:$0xf]
        %v256 = vld [vmem:[%s179 + $0x74] sm:$0xf]
        %v257 = vld [vmem:[%s179 + $0x78] sm:$0xf]
        %v258 = vld [vmem:[%s179 + $0x7c] sm:$0xf]
        %v260 = vperm.slane %v226, 0
        %v294 = vunpack.c.l.b16 %v227
        %v295 = vunpack.c.l.b16 %v228
        %v296 = vunpack.c.l.b16 %v229
        %v297 = vunpack.c.l.b16 %v230
        %v298 = vunpack.c.l.b16 %v231
        %v299 = vunpack.c.l.b16 %v232
        %v300 = vunpack.c.l.b16 %v233
        %v301 = vunpack.c.l.b16 %v234
        %v302 = vunpack.c.l.b16 %v235
        %v303 = vunpack.c.l.b16 %v236
        %v304 = vunpack.c.l.b16 %v237
        %v305 = vunpack.c.l.b16 %v238
        %v306 = vunpack.c.l.b16 %v239
        %v307 = vunpack.c.l.b16 %v240
        %v308 = vunpack.c.l.b16 %v241
        %v309 = vunpack.c.l.b16 %v242
        %v310 = vunpack.c.l.b16 %v243
        %v311 = vunpack.c.l.b16 %v244
        %v312 = vunpack.c.l.b16 %v245
        %v313 = vunpack.c.l.b16 %v246
        %v314 = vunpack.c.l.b16 %v247
        %v315 = vunpack.c.l.b16 %v248
        %v316 = vunpack.c.l.b16 %v249
        %v317 = vunpack.c.l.b16 %v250
        %v318 = vunpack.c.l.b16 %v251
        %v319 = vunpack.c.l.b16 %v252
        %v320 = vunpack.c.l.b16 %v253
        %v321 = vunpack.c.l.b16 %v254
        %v322 = vunpack.c.l.b16 %v255
        %v323 = vunpack.c.l.b16 %v256
        %v324 = vunpack.c.l.b16 %v257
        %v325 = vunpack.c.l.b16 %v258
        %v326 = vpack.c.b16 %v295, %v294
        %v327 = vpack.c.b16 %v297, %v296
        %v328 = vpack.c.b16 %v299, %v298
        %v329 = vpack.c.b16 %v301, %v300
        %v330 = vpack.c.b16 %v303, %v302
        %v331 = vpack.c.b16 %v305, %v304
        %v332 = vpack.c.b16 %v307, %v306
        %v333 = vpack.c.b16 %v309, %v308
        %v334 = vpack.c.b16 %v311, %v310
        %v335 = vpack.c.b16 %v313, %v312
        %v336 = vpack.c.b16 %v315, %v314
        %v337 = vpack.c.b16 %v317, %v316
        %v338 = vpack.c.b16 %v319, %v318
        %v339 = vpack.c.b16 %v321, %v320
        %v340 = vpack.c.b16 %v323, %v322
        %v341 = vpack.c.b16 %v325, %v324
        %v374 = vunpack.c.l.b16 %v210
        %v375 = vunpack.c.l.b16 %v211
        %v376 = vunpack.c.l.b16 %v212
        %v377 = vunpack.c.l.b16 %v213
        %v378 = vunpack.c.l.b16 %v214
        %v379 = vunpack.c.l.b16 %v215
        %v380 = vunpack.c.l.b16 %v216
        %v381 = vunpack.c.l.b16 %v217
        %v382 = vunpack.c.l.b16 %v218
        %v383 = vunpack.c.l.b16 %v219
        %v384 = vunpack.c.l.b16 %v220
        %v385 = vunpack.c.l.b16 %v221
        %v386 = vunpack.c.l.b16 %v222
        %v387 = vunpack.c.l.b16 %v223
        %v388 = vunpack.c.l.b16 %v224
        %v389 = vunpack.c.l.b16 %v225
        %v390 = vpack.c.b16 %v375, %v374
        %v391 = vpack.c.b16 %v377, %v376
        %v392 = vpack.c.b16 %v379, %v378
        %v393 = vpack.c.b16 %v381, %v380
        %v394 = vpack.c.b16 %v383, %v382
        %v395 = vpack.c.b16 %v385, %v384
        %v396 = vpack.c.b16 %v387, %v386
        %v397 = vpack.c.b16 %v389, %v388
        %406 = vmatpush.bf16.xpose.msra.mxu0 %v397
        %407 = vmatpush.bf16.xpose.msra.mxu0 %v396
        %408 = vmatpush.bf16.xpose.msra.mxu0 %v395
        %409 = vmatpush.bf16.xpose.msra.mxu0 %v394
        %410 = vmatpush.bf16.xpose.msra.mxu0 %v393
        %411 = vmatpush.bf16.xpose.msra.mxu0 %v392
        %412 = vmatpush.bf16.xpose.msra.mxu0 %v391
        %413 = vmatpush.bf16.xpose.msra.mxu0 %v390
        %414 = vmatmul.bf16.gmra.mxu0 %v326
        %v415 = vpop.f32.mrf.mxu0
        %v416 = vadd.f32 %v260, %v415
        %v417 = vpop.f32.mrf.mxu0
        %v418 = vadd.f32 %v260, %v417
        %419 = vmatmul.bf16.gmra.mxu0 %v327
        %v420 = vpop.f32.mrf.mxu0
        %v421 = vadd.f32 %v260, %v420
        %v422 = vpop.f32.mrf.mxu0
        %v423 = vadd.f32 %v260, %v422
        %424 = vmatmul.bf16.gmra.mxu0 %v328
        %v425 = vpop.f32.mrf.mxu0
        %v426 = vadd.f32 %v260, %v425
        %v427 = vpop.f32.mrf.mxu0
        %v428 = vadd.f32 %v260, %v427
        %429 = vmatmul.bf16.gmra.mxu0 %v329
        %v430 = vpop.f32.mrf.mxu0
        %v431 = vadd.f32 %v260, %v430
        %v432 = vpop.f32.mrf.mxu0
        %v433 = vadd.f32 %v260, %v432
        %434 = vmatmul.bf16.gmra.mxu0 %v330
        %v435 = vpop.f32.mrf.mxu0
        %v436 = vadd.f32 %v260, %v435
        %v437 = vpop.f32.mrf.mxu0
        %v438 = vadd.f32 %v260, %v437
        %439 = vmatmul.bf16.gmra.mxu0 %v331
        %v440 = vpop.f32.mrf.mxu0
        %v441 = vadd.f32 %v260, %v440
        %v442 = vpop.f32.mrf.mxu0
        %v443 = vadd.f32 %v260, %v442
        %444 = vmatmul.bf16.gmra.mxu0 %v332
        %v445 = vpop.f32.mrf.mxu0
        %v446 = vadd.f32 %v260, %v445
        %v447 = vpop.f32.mrf.mxu0
        %v448 = vadd.f32 %v260, %v447
        %449 = vmatmul.bf16.gmra.mxu0 %v333
        %v450 = vpop.f32.mrf.mxu0
        %v451 = vadd.f32 %v260, %v450
        %v452 = vpop.f32.mrf.mxu0
        %v453 = vadd.f32 %v260, %v452
        %454 = vmatmul.bf16.gmra.mxu0 %v334
        %v455 = vpop.f32.mrf.mxu0
        %v456 = vadd.f32 %v260, %v455
        %v457 = vpop.f32.mrf.mxu0
        %v458 = vadd.f32 %v260, %v457
        %459 = vmatmul.bf16.gmra.mxu0 %v335
        %v460 = vpop.f32.mrf.mxu0
        %v461 = vadd.f32 %v260, %v460
        %v462 = vpop.f32.mrf.mxu0
        %v463 = vadd.f32 %v260, %v462
        %464 = vmatmul.bf16.gmra.mxu0 %v336
        %v465 = vpop.f32.mrf.mxu0
        %v466 = vadd.f32 %v260, %v465
        %v467 = vpop.f32.mrf.mxu0
        %v468 = vadd.f32 %v260, %v467
        %469 = vmatmul.bf16.gmra.mxu0 %v337
        %v470 = vpop.f32.mrf.mxu0
        %v471 = vadd.f32 %v260, %v470
        %v472 = vpop.f32.mrf.mxu0
        %v473 = vadd.f32 %v260, %v472
        %474 = vmatmul.bf16.gmra.mxu0 %v338
        %v475 = vpop.f32.mrf.mxu0
        %v476 = vadd.f32 %v260, %v475
        %v477 = vpop.f32.mrf.mxu0
        %v478 = vadd.f32 %v260, %v477
        %479 = vmatmul.bf16.gmra.mxu0 %v339
        %v480 = vpop.f32.mrf.mxu0
        %v481 = vadd.f32 %v260, %v480
        %v482 = vpop.f32.mrf.mxu0
        %v483 = vadd.f32 %v260, %v482
        %484 = vmatmul.bf16.gmra.mxu0 %v340
        %v485 = vpop.f32.mrf.mxu0
        %v486 = vadd.f32 %v260, %v485
        %v487 = vpop.f32.mrf.mxu0
        %v488 = vadd.f32 %v260, %v487
        %489 = vmatmul.bf16.gmra.mxu0 %v341
        %v490 = vpop.f32.mrf.mxu0
        %v491 = vadd.f32 %v260, %v490
        %v492 = vpop.f32.mrf.mxu0
        %v493 = vadd.f32 %v260, %v492
        %494 = vdwg.mxu0
        %v495 = vmul.f32 %v416, 0.5
        %v496 = vmul.f32 %v418, 0.5
        %v497 = vmul.f32 %v421, 0.5
        %v498 = vmul.f32 %v423, 0.5
        %v499 = vmul.f32 %v426, 0.5
        %v500 = vmul.f32 %v428, 0.5
        %v501 = vmul.f32 %v431, 0.5
        %v502 = vmul.f32 %v433, 0.5
        %v503 = vmul.f32 %v436, 0.5
        %v504 = vmul.f32 %v438, 0.5
        %v505 = vmul.f32 %v441, 0.5
        %v506 = vmul.f32 %v443, 0.5
        %v507 = vmul.f32 %v446, 0.5
        %v508 = vmul.f32 %v448, 0.5
        %v509 = vmul.f32 %v451, 0.5
        %v510 = vmul.f32 %v453, 0.5
        %v511 = vmul.f32 %v456, 0.5
        %v512 = vmul.f32 %v458, 0.5
        %v513 = vmul.f32 %v461, 0.5
        %v514 = vmul.f32 %v463, 0.5
        %v515 = vmul.f32 %v466, 0.5
        %v516 = vmul.f32 %v468, 0.5
        %v517 = vmul.f32 %v471, 0.5
        %v518 = vmul.f32 %v473, 0.5
        %v519 = vmul.f32 %v476, 0.5
        %v520 = vmul.f32 %v478, 0.5
        %v521 = vmul.f32 %v481, 0.5
        %v522 = vmul.f32 %v483, 0.5
        %v523 = vmul.f32 %v486, 0.5
        %v524 = vmul.f32 %v488, 0.5
        %v525 = vmul.f32 %v491, 0.5
        %v526 = vmul.f32 %v493, 0.5
        %v527 = vtanh.pop %v495
        %v528 = vtanh.pop %v496
        %v529 = vtanh.pop %v497
        %v530 = vtanh.pop %v498
        %v531 = vtanh.pop %v499
        %v532 = vtanh.pop %v500
        %v533 = vtanh.pop %v501
        %v534 = vtanh.pop %v502
        %v535 = vtanh.pop %v503
        %v536 = vtanh.pop %v504
        %v537 = vtanh.pop %v505
        %v538 = vtanh.pop %v506
        %v539 = vtanh.pop %v507
        %v540 = vtanh.pop %v508
        %v541 = vtanh.pop %v509
        %v542 = vtanh.pop %v510
        %v543 = vtanh.pop %v511
        %v544 = vtanh.pop %v512
        %v545 = vtanh.pop %v513
        %v546 = vtanh.pop %v514
        %v547 = vtanh.pop %v515
        %v548 = vtanh.pop %v516
        %v549 = vtanh.pop %v517
        %v550 = vtanh.pop %v518
        %v551 = vtanh.pop %v519
        %v552 = vtanh.pop %v520
        %v553 = vtanh.pop %v521
        %v554 = vtanh.pop %v522
        %v555 = vtanh.pop %v523
        %v556 = vtanh.pop %v524
        %v557 = vtanh.pop %v525
        %v558 = vtanh.pop %v526
        %v559 = vmul.f32 %v527, 0.5
        %v560 = vmul.f32 %v528, 0.5
        %v561 = vmul.f32 %v529, 0.5
        %v562 = vmul.f32 %v530, 0.5
        %v563 = vmul.f32 %v531, 0.5
        %v564 = vmul.f32 %v532, 0.5
        %v565 = vmul.f32 %v533, 0.5
        %v566 = vmul.f32 %v534, 0.5
        %v567 = vmul.f32 %v535, 0.5
        %v568 = vmul.f32 %v536, 0.5
        %v569 = vmul.f32 %v537, 0.5
        %v570 = vmul.f32 %v538, 0.5
        %v571 = vmul.f32 %v539, 0.5
        %v572 = vmul.f32 %v540, 0.5
        %v573 = vmul.f32 %v541, 0.5
        %v574 = vmul.f32 %v542, 0.5
        %v575 = vmul.f32 %v543, 0.5
        %v576 = vmul.f32 %v544, 0.5
        %v577 = vmul.f32 %v545, 0.5
        %v578 = vmul.f32 %v546, 0.5
        %v579 = vmul.f32 %v547, 0.5
        %v580 = vmul.f32 %v548, 0.5
        %v581 = vmul.f32 %v549, 0.5
        %v582 = vmul.f32 %v550, 0.5
        %v583 = vmul.f32 %v551, 0.5
        %v584 = vmul.f32 %v552, 0.5
        %v585 = vmul.f32 %v553, 0.5
        %v586 = vmul.f32 %v554, 0.5
        %v587 = vmul.f32 %v555, 0.5
        %v588 = vmul.f32 %v556, 0.5
        %v589 = vmul.f32 %v557, 0.5
        %v590 = vmul.f32 %v558, 0.5
        %v591 = vadd.f32 %v559, 0.5
        %v592 = vadd.f32 %v560, 0.5
        %v593 = vadd.f32 %v561, 0.5
        %v594 = vadd.f32 %v562, 0.5
        %v595 = vadd.f32 %v563, 0.5
        %v596 = vadd.f32 %v564, 0.5
        %v597 = vadd.f32 %v565, 0.5
        %v598 = vadd.f32 %v566, 0.5
        %v599 = vadd.f32 %v567, 0.5
        %v600 = vadd.f32 %v568, 0.5
        %v601 = vadd.f32 %v569, 0.5
        %v602 = vadd.f32 %v570, 0.5
        %v603 = vadd.f32 %v571, 0.5
        %v604 = vadd.f32 %v572, 0.5
        %v605 = vadd.f32 %v573, 0.5
        %v606 = vadd.f32 %v574, 0.5
        %v607 = vadd.f32 %v575, 0.5
        %v608 = vadd.f32 %v576, 0.5
        %v609 = vadd.f32 %v577, 0.5
        %v610 = vadd.f32 %v578, 0.5
        %v611 = vadd.f32 %v579, 0.5
        %v612 = vadd.f32 %v580, 0.5
        %v613 = vadd.f32 %v581, 0.5
        %v614 = vadd.f32 %v582, 0.5
        %v615 = vadd.f32 %v583, 0.5
        %v616 = vadd.f32 %v584, 0.5
        %v617 = vadd.f32 %v585, 0.5
        %v618 = vadd.f32 %v586, 0.5
        %v619 = vadd.f32 %v587, 0.5
        %v620 = vadd.f32 %v588, 0.5
        %v621 = vadd.f32 %v589, 0.5
        %v622 = vadd.f32 %v590, 0.5
        %v623 = vpack.c.bf16 %v592, %v591
        %v624 = vpack.c.bf16 %v594, %v593
        %v625 = vpack.c.bf16 %v596, %v595
        %v626 = vpack.c.bf16 %v598, %v597
        %v627 = vpack.c.bf16 %v600, %v599
        %v628 = vpack.c.bf16 %v602, %v601
        %v629 = vpack.c.bf16 %v604, %v603
        %v630 = vpack.c.bf16 %v606, %v605
        %v631 = vpack.c.bf16 %v608, %v607
        %v632 = vpack.c.bf16 %v610, %v609
        %v633 = vpack.c.bf16 %v612, %v611
        %v634 = vpack.c.bf16 %v614, %v613
        %v635 = vpack.c.bf16 %v616, %v615
        %v636 = vpack.c.bf16 %v618, %v617
        %v637 = vpack.c.bf16 %v620, %v619
        %v638 = vpack.c.bf16 %v622, %v621
        %639 = vmatpush.bf16.xpose.msra.mxu0 %v397
        %640 = vmatpush.bf16.xpose.msra.mxu0 %v396
        %641 = vmatpush.bf16.xpose.msra.mxu0 %v395
        %642 = vmatpush.bf16.xpose.msra.mxu0 %v394
        %643 = vmatpush.bf16.xpose.msra.mxu0 %v393
        %644 = vmatpush.bf16.xpose.msra.mxu0 %v392
        %645 = vmatpush.bf16.xpose.msra.mxu0 %v391
        %646 = vmatpush.bf16.xpose.msra.mxu0 %v390
        %647 = vmatmul.bf16.gmra.mxu0 %v623
        %v648 = vpop.f32.mrf.mxu0
        %v649 = vadd.f32 %v260, %v648
        %v650 = vpop.f32.mrf.mxu0
        %v651 = vadd.f32 %v260, %v650
        %652 = vmatmul.bf16.gmra.mxu0 %v624
        %v653 = vpop.f32.mrf.mxu0
        %v654 = vadd.f32 %v260, %v653
        %v655 = vpop.f32.mrf.mxu0
        %v656 = vadd.f32 %v260, %v655
        %657 = vmatmul.bf16.gmra.mxu0 %v625
        %v658 = vpop.f32.mrf.mxu0
        %v659 = vadd.f32 %v260, %v658
        %v660 = vpop.f32.mrf.mxu0
        %v661 = vadd.f32 %v260, %v660
        %662 = vmatmul.bf16.gmra.mxu0 %v626
        %v663 = vpop.f32.mrf.mxu0
        %v664 = vadd.f32 %v260, %v663
        %v665 = vpop.f32.mrf.mxu0
        %v666 = vadd.f32 %v260, %v665
        %667 = vmatmul.bf16.gmra.mxu0 %v627
        %v668 = vpop.f32.mrf.mxu0
        %v669 = vadd.f32 %v260, %v668
        %v670 = vpop.f32.mrf.mxu0
        %v671 = vadd.f32 %v260, %v670
        %672 = vmatmul.bf16.gmra.mxu0 %v628
        %v673 = vpop.f32.mrf.mxu0
        %v674 = vadd.f32 %v260, %v673
        %v675 = vpop.f32.mrf.mxu0
        %v676 = vadd.f32 %v260, %v675
        %677 = vmatmul.bf16.gmra.mxu0 %v629
        %v678 = vpop.f32.mrf.mxu0
        %v679 = vadd.f32 %v260, %v678
        %v680 = vpop.f32.mrf.mxu0
        %v681 = vadd.f32 %v260, %v680
        %682 = vmatmul.bf16.gmra.mxu0 %v630
        %v683 = vpop.f32.mrf.mxu0
        %v684 = vadd.f32 %v260, %v683
        %v685 = vpop.f32.mrf.mxu0
        %v686 = vadd.f32 %v260, %v685
        %687 = vmatmul.bf16.gmra.mxu0 %v631
        %v688 = vpop.f32.mrf.mxu0
        %v689 = vadd.f32 %v260, %v688
        %v690 = vpop.f32.mrf.mxu0
        %v691 = vadd.f32 %v260, %v690
        %692 = vmatmul.bf16.gmra.mxu0 %v632
        %v693 = vpop.f32.mrf.mxu0
        %v694 = vadd.f32 %v260, %v693
        %v695 = vpop.f32.mrf.mxu0
        %v696 = vadd.f32 %v260, %v695
        %697 = vmatmul.bf16.gmra.mxu0 %v633
        %v698 = vpop.f32.mrf.mxu0
        %v699 = vadd.f32 %v260, %v698
        %v700 = vpop.f32.mrf.mxu0
        %v701 = vadd.f32 %v260, %v700
        %702 = vmatmul.bf16.gmra.mxu0 %v634
        %v703 = vpop.f32.mrf.mxu0
        %v704 = vadd.f32 %v260, %v703
        %v705 = vpop.f32.mrf.mxu0
        %v706 = vadd.f32 %v260, %v705
        %707 = vmatmul.bf16.gmra.mxu0 %v635
        %v708 = vpop.f32.mrf.mxu0
        %v709 = vadd.f32 %v260, %v708
        %v710 = vpop.f32.mrf.mxu0
        %v711 = vadd.f32 %v260, %v710
        %712 = vmatmul.bf16.gmra.mxu0 %v636
        %v713 = vpop.f32.mrf.mxu0
        %v714 = vadd.f32 %v260, %v713
        %v715 = vpop.f32.mrf.mxu0
        %v716 = vadd.f32 %v260, %v715
        %717 = vmatmul.bf16.gmra.mxu0 %v637
        %v718 = vpop.f32.mrf.mxu0
        %v719 = vadd.f32 %v260, %v718
        %v720 = vpop.f32.mrf.mxu0
        %v721 = vadd.f32 %v260, %v720
        %722 = vmatmul.bf16.gmra.mxu0 %v638
        %v723 = vpop.f32.mrf.mxu0
        %v724 = vadd.f32 %v260, %v723
        %v725 = vpop.f32.mrf.mxu0
        %v726 = vadd.f32 %v260, %v725
        %727 = vdwg.mxu0
        %v728 = vmul.f32 %v649, 0.5
        %v729 = vmul.f32 %v651, 0.5
        %v730 = vmul.f32 %v654, 0.5
        %v731 = vmul.f32 %v656, 0.5
        %v732 = vmul.f32 %v659, 0.5
        %v733 = vmul.f32 %v661, 0.5
        %v734 = vmul.f32 %v664, 0.5
        %v735 = vmul.f32 %v666, 0.5
        %v736 = vmul.f32 %v669, 0.5
        %v737 = vmul.f32 %v671, 0.5
        %v738 = vmul.f32 %v674, 0.5
        %v739 = vmul.f32 %v676, 0.5
        %v740 = vmul.f32 %v679, 0.5
        %v741 = vmul.f32 %v681, 0.5
        %v742 = vmul.f32 %v684, 0.5
        %v743 = vmul.f32 %v686, 0.5
        %v744 = vmul.f32 %v689, 0.5
        %v745 = vmul.f32 %v691, 0.5
        %v746 = vmul.f32 %v694, 0.5
        %v747 = vmul.f32 %v696, 0.5
        %v748 = vmul.f32 %v699, 0.5
        %v749 = vmul.f32 %v701, 0.5
        %v750 = vmul.f32 %v704, 0.5
        %v751 = vmul.f32 %v706, 0.5
        %v752 = vmul.f32 %v709, 0.5
        %v753 = vmul.f32 %v711, 0.5
        %v754 = vmul.f32 %v714, 0.5
        %v755 = vmul.f32 %v716, 0.5
        %v756 = vmul.f32 %v719, 0.5
        %v757 = vmul.f32 %v721, 0.5
        %v758 = vmul.f32 %v724, 0.5
        %v759 = vmul.f32 %v726, 0.5
        %v760 = vtanh.pop %v728
        %v761 = vtanh.pop %v729
        %v762 = vtanh.pop %v730
        %v763 = vtanh.pop %v731
        %v764 = vtanh.pop %v732
        %v765 = vtanh.pop %v733
        %v766 = vtanh.pop %v734
        %v767 = vtanh.pop %v735
        %v768 = vtanh.pop %v736
        %v769 = vtanh.pop %v737
        %v770 = vtanh.pop %v738
        %v771 = vtanh.pop %v739
        %v772 = vtanh.pop %v740
        %v773 = vtanh.pop %v741
        %v774 = vtanh.pop %v742
        %v775 = vtanh.pop %v743
        %v776 = vtanh.pop %v744
        %v777 = vtanh.pop %v745
        %v778 = vtanh.pop %v746
        %v779 = vtanh.pop %v747
        %v780 = vtanh.pop %v748
        %v781 = vtanh.pop %v749
        %v782 = vtanh.pop %v750
        %v783 = vtanh.pop %v751
        %v784 = vtanh.pop %v752
        %v785 = vtanh.pop %v753
        %v786 = vtanh.pop %v754
        %v787 = vtanh.pop %v755
        %v788 = vtanh.pop %v756
        %v789 = vtanh.pop %v757
        %v790 = vtanh.pop %v758
        %v791 = vtanh.pop %v759
        %v792 = vmul.f32 %v760, 0.5
        %v793 = vmul.f32 %v761, 0.5
        %v794 = vmul.f32 %v762, 0.5
        %v795 = vmul.f32 %v763, 0.5
        %v796 = vmul.f32 %v764, 0.5
        %v797 = vmul.f32 %v765, 0.5
        %v798 = vmul.f32 %v766, 0.5
        %v799 = vmul.f32 %v767, 0.5
        %v800 = vmul.f32 %v768, 0.5
        %v801 = vmul.f32 %v769, 0.5
        %v802 = vmul.f32 %v770, 0.5
        %v803 = vmul.f32 %v771, 0.5
        %v804 = vmul.f32 %v772, 0.5
        %v805 = vmul.f32 %v773, 0.5
        %v806 = vmul.f32 %v774, 0.5
        %v807 = vmul.f32 %v775, 0.5
        %v808 = vmul.f32 %v776, 0.5
        %v809 = vmul.f32 %v777, 0.5
        %v810 = vmul.f32 %v778, 0.5
        %v811 = vmul.f32 %v779, 0.5
        %v812 = vmul.f32 %v780, 0.5
        %v813 = vmul.f32 %v781, 0.5
        %v814 = vmul.f32 %v782, 0.5
        %v815 = vmul.f32 %v783, 0.5
        %v816 = vmul.f32 %v784, 0.5
        %v817 = vmul.f32 %v785, 0.5
        %v818 = vmul.f32 %v786, 0.5
        %v819 = vmul.f32 %v787, 0.5
        %v820 = vmul.f32 %v788, 0.5
        %v821 = vmul.f32 %v789, 0.5
        %v822 = vmul.f32 %v790, 0.5
        %v823 = vmul.f32 %v791, 0.5
        %v824 = vadd.f32 %v792, 0.5
        %v825 = vadd.f32 %v793, 0.5
        %v826 = vadd.f32 %v794, 0.5
        %v827 = vadd.f32 %v795, 0.5
        %v828 = vadd.f32 %v796, 0.5
        %v829 = vadd.f32 %v797, 0.5
        %v830 = vadd.f32 %v798, 0.5
        %v831 = vadd.f32 %v799, 0.5
        %v832 = vadd.f32 %v800, 0.5
        %v833 = vadd.f32 %v801, 0.5
        %v834 = vadd.f32 %v802, 0.5
        %v835 = vadd.f32 %v803, 0.5
        %v836 = vadd.f32 %v804, 0.5
        %v837 = vadd.f32 %v805, 0.5
        %v838 = vadd.f32 %v806, 0.5
        %v839 = vadd.f32 %v807, 0.5
        %v840 = vadd.f32 %v808, 0.5
        %v841 = vadd.f32 %v809, 0.5
        %v842 = vadd.f32 %v810, 0.5
        %v843 = vadd.f32 %v811, 0.5
        %v844 = vadd.f32 %v812, 0.5
        %v845 = vadd.f32 %v813, 0.5
        %v846 = vadd.f32 %v814, 0.5
        %v847 = vadd.f32 %v815, 0.5
        %v848 = vadd.f32 %v816, 0.5
        %v849 = vadd.f32 %v817, 0.5
        %v850 = vadd.f32 %v818, 0.5
        %v851 = vadd.f32 %v819, 0.5
        %v852 = vadd.f32 %v820, 0.5
        %v853 = vadd.f32 %v821, 0.5
        %v854 = vadd.f32 %v822, 0.5
        %v855 = vadd.f32 %v823, 0.5
        %v856 = vpack.c.bf16 %v824, %v824
        %v857 = vpack.c.bf16 %v825, %v825
        %v858 = vpack.c.bf16 %v826, %v826
        %v859 = vpack.c.bf16 %v827, %v827
        %v860 = vpack.c.bf16 %v828, %v828
        %v861 = vpack.c.bf16 %v829, %v829
        %v862 = vpack.c.bf16 %v830, %v830
        %v863 = vpack.c.bf16 %v831, %v831
        %v864 = vpack.c.bf16 %v832, %v832
        %v865 = vpack.c.bf16 %v833, %v833
        %v866 = vpack.c.bf16 %v834, %v834
        %v867 = vpack.c.bf16 %v835, %v835
        %v868 = vpack.c.bf16 %v836, %v836
        %v869 = vpack.c.bf16 %v837, %v837
        %v870 = vpack.c.bf16 %v838, %v838
        %v871 = vpack.c.bf16 %v839, %v839
        %v872 = vpack.c.bf16 %v840, %v840
        %v873 = vpack.c.bf16 %v841, %v841
        %v874 = vpack.c.bf16 %v842, %v842
        %v875 = vpack.c.bf16 %v843, %v843
        %v876 = vpack.c.bf16 %v844, %v844
        %v877 = vpack.c.bf16 %v845, %v845
        %v878 = vpack.c.bf16 %v846, %v846
        %v879 = vpack.c.bf16 %v847, %v847
        %v880 = vpack.c.bf16 %v848, %v848
        %v881 = vpack.c.bf16 %v849, %v849
        %v882 = vpack.c.bf16 %v850, %v850
        %v883 = vpack.c.bf16 %v851, %v851
        %v884 = vpack.c.bf16 %v852, %v852
        %v885 = vpack.c.bf16 %v853, %v853
        %v886 = vpack.c.bf16 %v854, %v854
        %v887 = vpack.c.bf16 %v855, %v855
        %888 = vst [vmem:[%s207] sm:$0xf] %v856
        %889 = vst [vmem:[%s207 + $0x4] sm:$0xf] %v857
        %890 = vst [vmem:[%s207 + $0x8] sm:$0xf] %v858
        %891 = vst [vmem:[%s207 + $0xc] sm:$0xf] %v859
        %892 = vst [vmem:[%s207 + $0x10] sm:$0xf] %v860
        %893 = vst [vmem:[%s207 + $0x14] sm:$0xf] %v861
        %894 = vst [vmem:[%s207 + $0x18] sm:$0xf] %v862
        %895 = vst [vmem:[%s207 + $0x1c] sm:$0xf] %v863
        %896 = vst [vmem:[%s207 + $0x20] sm:$0xf] %v864
        %897 = vst [vmem:[%s207 + $0x24] sm:$0xf] %v865
        %898 = vst [vmem:[%s207 + $0x28] sm:$0xf] %v866
        %899 = vst [vmem:[%s207 + $0x2c] sm:$0xf] %v867
        %900 = vst [vmem:[%s207 + $0x30] sm:$0xf] %v868
        %901 = vst [vmem:[%s207 + $0x34] sm:$0xf] %v869
        %902 = vst [vmem:[%s207 + $0x38] sm:$0xf] %v870
        %903 = vst [vmem:[%s207 + $0x3c] sm:$0xf] %v871
        %904 = vst [vmem:[%s207 + $0x40] sm:$0xf] %v872
        %905 = vst [vmem:[%s207 + $0x44] sm:$0xf] %v873
        %906 = vst [vmem:[%s207 + $0x48] sm:$0xf] %v874
        %907 = vst [vmem:[%s207 + $0x4c] sm:$0xf] %v875
        %908 = vst [vmem:[%s207 + $0x50] sm:$0xf] %v876
        %909 = vst [vmem:[%s207 + $0x54] sm:$0xf] %v877
        %910 = vst [vmem:[%s207 + $0x58] sm:$0xf] %v878
        %911 = vst [vmem:[%s207 + $0x5c] sm:$0xf] %v879
        %912 = vst [vmem:[%s207 + $0x60] sm:$0xf] %v880
        %913 = vst [vmem:[%s207 + $0x64] sm:$0xf] %v881
        %914 = vst [vmem:[%s207 + $0x68] sm:$0xf] %v882
        %915 = vst [vmem:[%s207 + $0x6c] sm:$0xf] %v883
        %916 = vst [vmem:[%s207 + $0x70] sm:$0xf] %v884
        %917 = vst [vmem:[%s207 + $0x74] sm:$0xf] %v885
        %918 = vst [vmem:[%s207 + $0x78] sm:$0xf] %v886
        %919 = vst [vmem:[%s207 + $0x7c] sm:$0xf] %v887
        %s920 = sand.u32 %s97, 1
        %s921 = scalar_lea.sflag [#allocation4], %s920
        %s922 = sand.u32 %s97, 1
        %s923 = smul.addr %s922, 128
        %s924 = scalar_lea.vmem [#allocation7], %s923
        // Predicated region
        $region41: #{tpu_custom_call.1} parent=31 // pred_check
          %p925 = pneg %p107
        $region42: #{tpu_custom_call.1} parent=31 // pred_check_branch
          %927 = sbr.rel (%p925) target = $region44
        $region43: #{tpu_custom_call.1} parent=31 // pred_region
          %s928 = smul.u32 32, %s21
          %930 = vsyncadd %s921, 0
          %s931 = smul.addr %s928, 4
          %s932 = scalar_lea.hbm %s3, %s931
          %s933 = sshll.u32 %s924, 4
          %s934 = int_to_ptr.vmem [resolvable:$true] %s933
          %s935 = sshll.u32 %s932, 4
          %s936 = int_to_ptr.hbm [resolvable:$true] %s935
          %941 = dma.vmem_to_hbm [thread:$0]  %s934, 2048, %s936, %s921, 64, 64, 4
        $region44: #{tpu_custom_call.1} parent=31 // pred_fallthru
          _
      $region32: #{tpu_custom_call.1} parent=5 // pred_fallthru
        _
      %p942 = scmp.le.s32.totalorder 2, %s16
      // Predicated region
      $region45: #{tpu_custom_call.1} parent=5 // pred_check
        %p943 = pneg %p942
      $region46: #{tpu_custom_call.1} parent=5 // pred_check_branch
        %945 = sbr.rel (%p943) target = $region48
      $region47: #{tpu_custom_call.1} parent=5 // pred_region
        %s946 = ssub.s32 %s16, 2
        // Predicated region
        $region49: #{tpu_custom_call.1} parent=47 // pred_check
          %p947 = pneg %p113
        $region50: #{tpu_custom_call.1} parent=47 // pred_check_branch
          %949 = sbr.rel (%p947) target = $region52
        $region51: #{tpu_custom_call.1} parent=47 // pred_region
          %s950 = sand.u32 %s98, 1
          %s951 = scalar_lea.sflag [#allocation4], %s950
          %s952 = sand.u32 %s98, 1
          %s953 = smul.addr %s952, 128
          %s954 = scalar_lea.vmem [#allocation7], %s953
          %956 = dma.done %s951, 2048
        $region52: #{tpu_custom_call.1} parent=47 // pred_fallthru
          _
      $region48: #{tpu_custom_call.1} parent=5 // pred_fallthru
        _
    $region6: #{tpu_custom_call.1} parent=1 // loop_footer
      %s20 = sadd.s32 1, %s16
    $region7: #{tpu_custom_call.1} parent=1 // loop_footer_branch
      %15 = sbr.rel target = $region3
    $region8: #{tpu_custom_call.1} parent=1 // loop_exit
      _
    %957 = vsyncpa [#allocation3], 1
    %s958 = scalar_lea.sflag [#allocation3], 1
    %959 = vsyncpa %s958, 1
    %960 = vsyncpa [#allocation6], 1
    %961 = vsyncpa [#allocation4], 1
    %s962 = scalar_lea.sflag [#allocation4], 1
    %963 = vsyncpa %s962, 1

</llo_original>
